<compile_context>
chip_gen: v7x
topology: tpu7x:2x2x1
jax: 0.10.0
libtpu: 0.0.40
codegen_flags: <defaults>
</compile_context>

<pallas_src>
import functools

import jax
import jax.numpy as jnp
from jax.experimental import pallas as pl
from jax.experimental.pallas import tpu as pltpu

_MIB = 1 << 20
_TM_CAP = 256      # row-tile cap: fills the 256-wide v6e/v7x MXU
_CBUF = 2          # budget factor for constant-index operands (default double-buffer)


def _round_up(x, m):
    return ((x + m - 1) // m) * m


@functools.lru_cache(maxsize=None)
def _vmem_soft_cap():
    """Usable VMEM budget (bytes), generation-aware with a safe fallback."""
    try:
        phys = int(pltpu.get_tpu_info().vmem_capacity_bytes)  # 128 MiB v5e/v6e, 64 MiB v7x
    except Exception:
        phys = 64 * _MIB                                      # assume the smallest (v7x)
    return max(32 * _MIB, phys * 3 // 4)                      # headroom for Mosaic scratch


def _vmem_limit(need):
    """vmem_limit_bytes: floor 32 MiB, generation soft cap, never below `need`."""
    return int(min(max(need * 5 // 4, 32 * _MIB), max(_vmem_soft_cap(), need + 2 * _MIB)))


def _pick_tm(batch, cap):
    """Row tile: multiple of 8 (or the full batch when B <= 8), minimal padding,
    and >= 2 row tiles when the batch allows (keeps v7x's 2nd TensorCore busy)."""
    cap = max(8, (int(cap) // 8) * 8)
    if batch <= 8:
        return batch                          # block == full batch dim: zero padding
    b8 = _round_up(batch, 8)
    upper = min(cap, b8)
    if b8 >= 16:                              # prefer >= 2 row tiles (v7x megacore)
        upper = min(upper, max(8, (b8 // 2) // 8 * 8))
    for tm in range(upper, 7, -8):
        if b8 % tm == 0:                      # exact divide: B_pad == round_up(B, 8)
            return tm
    return 8


def _pick_tk(F, e_pad, budget):
    """Reduction tile (streaming path): prefer an exact divisor of F (no zero
    reduction tiles), as large as the VMEM budget allows (<= 2048)."""
    cap = (budget // 3) // (4 * e_pad)        # double-buffered bf16 w_bb tile <= budget/3
    cap = max(128, min(2048, (cap // 128) * 128))
    if F <= cap:
        return F                              # single reduction step (block == full dim)
    for tk in range(cap, 127, -128):
        if F % tk == 0:
            return tk
    return cap                                # fall back: F padded up to a multiple of cap


# --------------------------------------------------------------------------- #
# Kernels
# --------------------------------------------------------------------------- #
def _cls_resident_kernel(x_ref, wb_ref, bb_ref, wh_ref, bh_ref, o_ref):
    """grid = (row tiles,); all weights VMEM-resident -> single fused pass."""
    emb = jnp.dot(x_ref[...], wb_ref[...], preferred_element_type=jnp.float32)
    emb = jnp.maximum(emb + bb_ref[...], 0.0)
    logit = jnp.dot(emb.astype(jnp.bfloat16), wh_ref[...],
                    preferred_element_type=jnp.float32) + bh_ref[...]
    o_ref[...] = logit.astype(o_ref.dtype)


def _emb_resident_kernel(x_ref, wb_ref, bb_ref, o_ref):
    """num_classes == 0 (nn.Identity head), resident weights."""
    emb = jnp.dot(x_ref[...], wb_ref[...], preferred_element_type=jnp.float32)
    o_ref[...] = jnp.maximum(emb + bb_ref[...], 0.0).astype(o_ref.dtype)


def _cls_stream_kernel(x_ref, wb_ref, bb_ref, wh_ref, bh_ref, o_ref, acc_ref):
    """grid = (row tiles, F tiles); acc_ref [TM, E_pad] f32 embedding accumulator."""
    k = pl.program_id(1)

    @pl.when(k == 0)
    def _():
        # Fold the backbone bias into the accumulator init (saves a VPU add).
        acc_ref[...] = jnp.broadcast_to(bb_ref[...], acc_ref.shape)

    acc_ref[...] += jnp.dot(x_ref[...], wb_ref[...],
                            preferred_element_type=jnp.float32)

    @pl.when(k == pl.num_programs(1) - 1)
    def _():
        # NOTE: if TM*E_pad ever becomes very large, split this epilogue over E
        # chunks to bound vreg live ranges; at TM <= 256 it stages through VMEM.
        emb = jnp.maximum(acc_ref[...], 0.0)
        logit = jnp.dot(emb.astype(jnp.bfloat16), wh_ref[...],
                        preferred_element_type=jnp.float32) + bh_ref[...]
        o_ref[...] = logit.astype(o_ref.dtype)


def _emb_stream_kernel(x_ref, wb_ref, bb_ref, o_ref, acc_ref):
    """num_classes == 0 path, streamed reduction."""
    k = pl.program_id(1)

    @pl.when(k == 0)
    def _():
        acc_ref[...] = jnp.broadcast_to(bb_ref[...], acc_ref.shape)

    acc_ref[...] += jnp.dot(x_ref[...], wb_ref[...],
                            preferred_element_type=jnp.float32)

    @pl.when(k == pl.num_programs(1) - 1)
    def _():
        o_ref[...] = jnp.maximum(acc_ref[...], 0.0).astype(o_ref.dtype)


# --------------------------------------------------------------------------- #
# Parameter preparation (hoisted out of the per-call forward)
# --------------------------------------------------------------------------- #
def prepare_params(params, num_classes, *, _force_streaming=False, _max_tk=None):
    """Pad / cast the weights ONCE and pick the kernel path (resident vs streamed)."""
    F, E = params["w_bb"].shape
    e_pad = _round_up(E, 128)
    n_pad = _round_up(num_classes, 128) if num_classes > 0 else 0
    n_out_pad = n_pad if num_classes > 0 else e_pad

    w_bb = params["w_bb"].astype(jnp.bfloat16)
    if e_pad != E:
        w_bb = jnp.pad(w_bb, ((0, 0), (0, e_pad - E)))
    b_bb = jnp.pad(params["b_bb"].astype(jnp.float32), (0, e_pad - E)).reshape(1, e_pad)

    prepped = dict(F=F, E=E, E_pad=e_pad, num_classes=num_classes,
                   N_pad=n_pad, b_bb=b_bb)

    head_bytes = 0
    if num_classes > 0:
        w_head = jnp.pad(params["w_head"][:, :num_classes].astype(jnp.bfloat16),
                         ((0, e_pad - E), (0, n_pad - num_classes)))
        b_head = jnp.pad(params["b_head"][:num_classes].astype(jnp.float32),
                         (0, n_pad - num_classes)).reshape(1, n_pad)
        prepped["w_head"], prepped["b_head"] = w_head, b_head
        head_bytes = _CBUF * (e_pad * n_pad * 2 + n_pad * 4)

    budget = _vmem_soft_cap() - 8 * _MIB
    # Resident iff weights + the minimum (TM=8) activation/output tiles fit VMEM.
    resident_min_need = (_CBUF * (F * e_pad * 2 + e_pad * 4) + head_bytes
                         + 2 * 8 * F * 2 + 2 * 8 * n_out_pad * 4)
    resident = (resident_min_need <= budget) and not _force_streaming
    prepped["resident"] = resident

    if resident:
        prepped["w_bb"] = w_bb                       # natural F extent: no F padding at all
    else:
        tk = _pick_tk(F, e_pad, budget)
        if _max_tk is not None:
            tk = min(tk, _max_tk)
        f_pad = _round_up(F, tk)
        if f_pad != F:
            w_bb = jnp.pad(w_bb, ((0, f_pad - F), (0, 0)))
        prepped.update(w_bb=w_bb, TK=tk, F_pad=f_pad)
    return prepped


# --------------------------------------------------------------------------- #
# Forward
# --------------------------------------------------------------------------- #
def cls_model_forward(images, prepped):
    """images: [B, C, H, W] float32.  Returns [B, num_classes] logits, or the
    [B, E] embedding when num_classes == 0 (nn.Identity head)."""
    B, C, H, W = images.shape
    F, E, e_pad = prepped["F"], prepped["E"], prepped["E_pad"]
    assert C * H * W == F, "image size does not match backbone weights"
    num_classes = prepped["num_classes"]
    has_head = num_classes > 0
    n_pad = prepped["N_pad"]
    n_out_pad = n_pad if has_head else e_pad
    budget = _vmem_soft_cap() - 4 * _MIB
    head_bytes = _CBUF * (e_pad * n_pad * 2 + n_pad * 4) if has_head else 0

    x = images.reshape(B, F).astype(jnp.bfloat16)    # bf16 cast fused with the reshape

    if prepped["resident"]:
        # -------- weights fully VMEM-resident: 1-D grid, no reduction axis -------- #
        fixed = _CBUF * (F * e_pad * 2 + e_pad * 4) + head_bytes
        per_row = 2 * F * 2 + 2 * n_out_pad * 4       # x + out tiles (double-buffered)
        tm = _pick_tm(B, min(_TM_CAP, (budget - fixed) // per_row))
        b_pad = _round_up(B, tm)
        if b_pad != B:                                # pad only when actually required
            x = jnp.pad(x, ((0, b_pad - B), (0, 0)))
        grid = (b_pad // tm,)
        need = fixed + tm * per_row

        in_specs = [pl.BlockSpec((tm, F), lambda i: (i, 0)),
                    pl.BlockSpec((F, e_pad), lambda i: (0, 0)),
                    pl.BlockSpec((1, e_pad), lambda i: (0, 0))]
        operands = [x, prepped["w_bb"], prepped["b_bb"]]
        if has_head:
            in_specs += [pl.BlockSpec((e_pad, n_pad), lambda i: (0, 0)),
                         pl.BlockSpec((1, n_pad), lambda i: (0, 0))]
            operands += [prepped["w_head"], prepped["b_head"]]
            kernel = _cls_resident_kernel
        else:
            kernel = _emb_resident_kernel

        flops = 2 * b_pad * F * e_pad + (2 * b_pad * e_pad * n_pad if has_head else 0)
        bytes_accessed = (b_pad * F * 2 + F * e_pad * 2 + e_pad * 4
                          + (e_pad * n_pad * 2 + n_pad * 4 if has_head else 0)
                          + b_pad * n_out_pad * 4)

        out = pl.pallas_call(
            kernel,
            out_shape=jax.ShapeDtypeStruct((b_pad, n_out_pad), jnp.float32),
            grid_spec=pltpu.PrefetchScalarGridSpec(
                num_scalar_prefetch=0,
                grid=grid,
                in_specs=in_specs,
                out_specs=pl.BlockSpec((tm, n_out_pad), lambda i: (i, 0)),
            ),
            compiler_params=pltpu.CompilerParams(
                dimension_semantics=("parallel",),
                vmem_limit_bytes=_vmem_limit(need),
            ),
            cost_estimate=pl.CostEstimate(
                flops=int(flops), transcendentals=0,
                bytes_accessed=int(bytes_accessed)),
        )(*operands)
    else:
        # -------- streamed reduction over F with a resident f32 accumulator ------- #
        tk, f_pad = prepped["TK"], prepped["F_pad"]
        fixed = 2 * tk * e_pad * 2 + _CBUF * e_pad * 4 + head_bytes
        per_row = 2 * tk * 2 + e_pad * 4 + 2 * n_out_pad * 4   # x tiles + acc + out tiles
        tm = _pick_tm(B, min(_TM_CAP, (budget - fixed) // per_row))
        b_pad = _round_up(B, tm)
        if (b_pad, f_pad) != (B, F):                  # pad only when actually required
            x = jnp.pad(x, ((0, b_pad - B), (0, f_pad - F)))
        grid = (b_pad // tm, f_pad // tk)
        need = fixed + tm * per_row

        in_specs = [pl.BlockSpec((tm, tk), lambda i, k: (i, k)),
                    pl.BlockSpec((tk, e_pad), lambda i, k: (k, 0)),
                    pl.BlockSpec((1, e_pad), lambda i, k: (0, 0))]
        operands = [x, prepped["w_bb"], prepped["b_bb"]]
        if has_head:
            in_specs += [pl.BlockSpec((e_pad, n_pad), lambda i, k: (0, 0)),
                         pl.BlockSpec((1, n_pad), lambda i, k: (0, 0))]
            operands += [prepped["w_head"], prepped["b_head"]]
            kernel = _cls_stream_kernel
        else:
            kernel = _emb_stream_kernel

        n_row_tiles = b_pad // tm
        flops = 2 * b_pad * f_pad * e_pad + (2 * b_pad * e_pad * n_pad if has_head else 0)
        # w_bb is re-streamed once per row tile (its index_map ignores i).
        bytes_accessed = (b_pad * f_pad * 2
                          + n_row_tiles * f_pad * e_pad * 2
                          + e_pad * 4
                          + (e_pad * n_pad * 2 + n_pad * 4 if has_head else 0)
                          + b_pad * n_out_pad * 4)

        out = pl.pallas_call(
            kernel,
            out_shape=jax.ShapeDtypeStruct((b_pad, n_out_pad), jnp.float32),
            grid_spec=pltpu.PrefetchScalarGridSpec(
                num_scalar_prefetch=0,
                grid=grid,
                in_specs=in_specs,
                out_specs=pl.BlockSpec((tm, n_out_pad), lambda i, k: (i, 0)),
                scratch_shapes=[pltpu.VMEM((tm, e_pad), jnp.float32)],
            ),
            compiler_params=pltpu.CompilerParams(
                dimension_semantics=("parallel", "arbitrary"),
                vmem_limit_bytes=_vmem_limit(need),
            ),
            cost_estimate=pl.CostEstimate(
                flops=int(flops), transcendentals=0,
                bytes_accessed=int(bytes_accessed)),
        )(*operands)

    n_out = num_classes if has_head else E
    return out[:B, :n_out]


def make_cls_forward(params, num_classes):
    """Prepare (pad/cast) the weights once and return a jitted forward fn."""
    prepped = prepare_params(params, num_classes)
    return jax.jit(lambda images: cls_model_forward(images, prepped))


def init_params(key, in_features, embed_dim, num_classes):
    """Deterministic parameter init (synthetic — not a checkpoint load)."""
    k1, k2, k3, k4 = jax.random.split(key, 4)
    w_bb = jax.random.normal(k1, (in_features, embed_dim), jnp.float32) * 0.02
    b_bb = jax.random.normal(k2, (embed_dim,), jnp.float32) * 0.02
    w_head = jax.random.normal(k3, (embed_dim, max(num_classes, 1)), jnp.float32) * 0.02
    b_head = jax.random.normal(k4, (max(num_classes, 1),), jnp.float32) * 0.02
    return {"w_bb": w_bb, "b_bb": b_bb, "w_head": w_head, "b_head": b_head}


# TODO(synk): the real `backbone` is an arbitrary nn.Module passed to the
# constructor; a linear patch-embedding + ReLU stands in for it here.

if __name__ == "__main__":
    # Small shapes consistent with the module's forward:
    # images [B=2, C=4, H=16, W=16] -> F=1024, embed_dim=32, num_classes=10
    B, C, H, W = 2, 4, 16, 16
    embed_dim = 32
    num_classes = 10

    key = jax.random.PRNGKey(0)
    k_img, k_param = jax.random.split(key)
    images = jax.random.normal(k_img, (B, C, H, W), jnp.float32)
    params = init_params(k_param, C * H * W, embed_dim, num_classes)

    # Pure-JAX f32 reference of the same math (kernel uses bf16 operands,
    # f32 accumulation -> relaxed tolerance).
    x_flat = images.reshape(B, -1)
    emb_ref = jnp.maximum(x_flat @ params["w_bb"] + params["b_bb"], 0.0)
    logit_ref = emb_ref @ params["w_head"] + params["b_head"]

    # 1) Fused backbone + head: VMEM-resident-weight fast path (demo shapes).
    fwd = make_cls_forward(params, num_classes)
    logits = jax.block_until_ready(fwd(images))
    assert logits.shape == (B, num_classes)
    assert jnp.allclose(logits, logit_ref, atol=5e-2, rtol=5e-2)

    # 2) nn.Identity() head (num_classes == 0) -> the embedding itself.
    emb_out = jax.block_until_ready(make_cls_forward(params, 0)(images))
    assert emb_out.shape == (B, embed_dim)
    assert jnp.allclose(emb_out, emb_ref, atol=5e-2, rtol=5e-2)

    # 3) Exercise the streaming (tiled-reduction) path too, forcing small
    #    reduction tiles so the accumulator logic runs over multiple k-steps.
    prepped_stream = prepare_params(params, num_classes,
                                    _force_streaming=True, _max_tk=256)
    logits_s = jax.block_until_ready(
        jax.jit(lambda im: cls_model_forward(im, prepped_stream))(images))
    assert logits_s.shape == (B, num_classes)
    assert jnp.allclose(logits_s, logit_ref, atol=5e-2, rtol=5e-2)

    print("KERNEL_OK")
</pallas_src>

<mosaic_0001>
module attributes {stable_mosaic.version = 11 : i64} {
  func.func @_cls_resident_kernel(%arg0: i32, %arg1: memref<2x1024xbf16, #tpu.memory_space<vmem>>, %arg2: memref<1024x128xbf16, #tpu.memory_space<vmem>>, %arg3: memref<1x128xf32, #tpu.memory_space<vmem>>, %arg4: memref<128x128xbf16, #tpu.memory_space<vmem>>, %arg5: memref<1x128xf32, #tpu.memory_space<vmem>>, %arg6: memref<2x128xf32, #tpu.memory_space<vmem>>) attributes {dimension_semantics = [#tpu.dimension_semantics<parallel>], iteration_bounds = array<i64: 1>, scalar_prefetch = 0 : i64, scratch_operands = 0 : i64, tpu.core_type = #tpu.core_type<tc>, window_params = [{transform_indices = @transform_0, window_bounds = array<i64: 2, 1024>}, {pipeline_mode = #tpu.pipeline_mode<synchronous>, transform_indices = @transform_1, window_bounds = array<i64: 1024, 128>}, {pipeline_mode = #tpu.pipeline_mode<synchronous>, transform_indices = @transform_2, window_bounds = array<i64: 1, 128>}, {pipeline_mode = #tpu.pipeline_mode<synchronous>, transform_indices = @transform_3, window_bounds = array<i64: 128, 128>}, {pipeline_mode = #tpu.pipeline_mode<synchronous>, transform_indices = @transform_4, window_bounds = array<i64: 1, 128>}, {transform_indices = @transform_5, window_bounds = array<i64: 2, 128>}]} {
    %c0 = arith.constant 0 : index
    %c0_0 = arith.constant 0 : index
    %0 = vector.load %arg1[%c0, %c0_0] : memref<2x1024xbf16, #tpu.memory_space<vmem>>, vector<2x1024xbf16>
    %c0_1 = arith.constant 0 : index
    %c0_2 = arith.constant 0 : index
    %1 = vector.load %arg2[%c0_1, %c0_2] : memref<1024x128xbf16, #tpu.memory_space<vmem>>, vector<1024x128xbf16>
    %cst = arith.constant dense<0.000000e+00> : vector<2x128xf32>
    %2 = tpu.matmul %0, %1, %cst {dimension_numbers = #tpu.dot_dimension_numbers<[1], [0], [0], [1], [0, 0, 1, 1], [], []>} : vector<2x1024xbf16>, vector<1024x128xbf16>, vector<2x128xf32> -> vector<2x128xf32>
    %c0_3 = arith.constant 0 : index
    %c0_4 = arith.constant 0 : index
    %3 = vector.load %arg3[%c0_3, %c0_4] : memref<1x128xf32, #tpu.memory_space<vmem>>, vector<1x128xf32>
    %4 = vector.broadcast %3 : vector<1x128xf32> to vector<2x128xf32>
    %5 = arith.addf %2, %4 : vector<2x128xf32>
    %cst_5 = arith.constant 0.000000e+00 : f32
    %6 = vector.broadcast %cst_5 : f32 to vector<2x128xf32>
    %7 = arith.maximumf %5, %6 : vector<2x128xf32>
    %8 = arith.truncf %7 : vector<2x128xf32> to vector<2x128xbf16>
    %c0_6 = arith.constant 0 : index
    %c0_7 = arith.constant 0 : index
    %9 = vector.load %arg4[%c0_6, %c0_7] : memref<128x128xbf16, #tpu.memory_space<vmem>>, vector<128x128xbf16>
    %cst_8 = arith.constant dense<0.000000e+00> : vector<2x128xf32>
    %10 = tpu.matmul %8, %9, %cst_8 {dimension_numbers = #tpu.dot_dimension_numbers<[1], [0], [0], [1], [0, 0, 1, 1], [], []>} : vector<2x128xbf16>, vector<128x128xbf16>, vector<2x128xf32> -> vector<2x128xf32>
    %c0_9 = arith.constant 0 : index
    %c0_10 = arith.constant 0 : index
    %11 = vector.load %arg5[%c0_9, %c0_10] : memref<1x128xf32, #tpu.memory_space<vmem>>, vector<1x128xf32>
    %12 = vector.broadcast %11 : vector<1x128xf32> to vector<2x128xf32>
    %13 = arith.addf %10, %12 : vector<2x128xf32>
    %c0_11 = arith.constant 0 : index
    %c0_12 = arith.constant 0 : index
    %14 = vector.load %arg6[%c0_11, %c0_12] : memref<2x128xf32, #tpu.memory_space<vmem>>, vector<2x128xf32>
    tpu.vector_store %arg6[%c0_11, %c0_12], %13 {strides = array<i32>} : memref<2x128xf32, #tpu.memory_space<vmem>>, vector<2x128xf32>,
    return
  }
  func.func @transform_0(%arg0: i32) -> (i32, i32) {
    %c0_i32 = arith.constant 0 : i32
    %c0_i32_0 = arith.constant 0 : i32
    return %arg0, %c0_i32 : i32, i32
  }
  func.func @transform_1(%arg0: i32) -> (i32, i32) {
    %c0_i32 = arith.constant 0 : i32
    %c0_i32_0 = arith.constant 0 : i32
    %c0_i32_1 = arith.constant 0 : i32
    return %c0_i32, %c0_i32_0 : i32, i32
  }
  func.func @transform_2(%arg0: i32) -> (i32, i32) {
    %c0_i32 = arith.constant 0 : i32
    %c0_i32_0 = arith.constant 0 : i32
    %c0_i32_1 = arith.constant 0 : i32
    return %c0_i32, %c0_i32_0 : i32, i32
  }
  func.func @transform_3(%arg0: i32) -> (i32, i32) {
    %c0_i32 = arith.constant 0 : i32
    %c0_i32_0 = arith.constant 0 : i32
    %c0_i32_1 = arith.constant 0 : i32
    return %c0_i32, %c0_i32_0 : i32, i32
  }
  func.func @transform_4(%arg0: i32) -> (i32, i32) {
    %c0_i32 = arith.constant 0 : i32
    %c0_i32_0 = arith.constant 0 : i32
    %c0_i32_1 = arith.constant 0 : i32
    return %c0_i32, %c0_i32_0 : i32, i32
  }
  func.func @transform_5(%arg0: i32) -> (i32, i32) {
    %c0_i32 = arith.constant 0 : i32
    %c0_i32_0 = arith.constant 0 : i32
    return %arg0, %c0_i32 : i32, i32
  }
}

</mosaic_0001>

<llo_original>
// kernel: _lambda_.1
$region0: #{_lambda_.1}
  #allocation0 [shape = 'u32[]', space=smem, size = 0x4, offset = 0x4, fixed_abs, tag = 'smem constant byte address 0x4 - core index']
  #allocation1 [shape = 'u32[144,128]{1,0:T(1,128)}', space=vmem, size = 0x12000, scoped, tag = 'internal scratch']
  %s0 = inlined_call_operand.vmem [shape: bf16[2,1024], index: 0, kind: input, shape index: {}]
  %s1 = inlined_call_operand.hbm [shape: bf16[1024,128], index: 1, kind: input, shape index: {}]
  %s2 = inlined_call_operand.vmem [shape: f32[1,128], index: 2, kind: input, shape index: {}]
  %s3 = inlined_call_operand.vmem [shape: bf16[128,128], index: 3, kind: input, shape index: {}]
  %s4 = inlined_call_operand.vmem [shape: f32[1,128], index: 4, kind: input, shape index: {}]
  %s5 = inlined_call_operand.hbm [shape: f32[2,128], index: 5, kind: output, shape index: {}]
  %s6 = sld [smem:[#allocation0]]
  $region34: #{_lambda_.1} parent=0
    _
  %s8 = ssub.s32 1, %s6
  %s9 = scalar_select 0, %s8, %s6
  $region1: #{_lambda_.1} parent=0
    #allocation2 [shape = 'u8[262144]{0}', space=vmem, size = 0x40000, scoped, tag = 'input window, operand 1, single buffered']
    #allocation3 [shape = 's32[1]{0}', space=sflag, size = 0x4, scoped, tag = 'scoped memory for _lambda_.1']
    #allocation4 [shape = 's32[1]{0}', space=sflag, size = 0x4, scoped, tag = 'scoped memory for _lambda_.1']
    #allocation5 [shape = 'u8[1024]{0}', space=vmem, size = 0x400, scoped, tag = 'output window, operand 0, single buffered']
    %10 = vsyncpa [#allocation3], 0
    %11 = vsyncpa [#allocation4], 0
    // Predicated region
    $region2: #{_lambda_.1} parent=1 // pred_check
      _
    $region3: #{_lambda_.1} parent=1 // pred_check_branch
      %13 = sbr.rel (0) target = $region5
    $region4: #{_lambda_.1} parent=1 // pred_region
      _
    $region5: #{_lambda_.1} parent=1 // pred_fallthru
      _
    // Predicated region
    $region6: #{_lambda_.1} parent=1 // pred_check
      _
    $region7: #{_lambda_.1} parent=1 // pred_check_branch
      %15 = sbr.rel (0) target = $region9
    $region8: #{_lambda_.1} parent=1 // pred_region
      %s17 = ssub.s32 8192, 8192
      %18 = vsyncadd [#allocation3], %s17
      %s19 = sshll.u32 [#allocation2], 4
      %s20 = int_to_ptr.vmem [resolvable:$true] %s19
      %25 = dma.hbm_to_vmem [thread:$0]  %s1, 8192, %s20, [#allocation3], 64, 64, 4
    $region9: #{_lambda_.1} parent=1 // pred_fallthru
      _
    // Predicated region
    $region10: #{_lambda_.1} parent=1 // pred_check
      _
    $region11: #{_lambda_.1} parent=1 // pred_check_branch
      %27 = sbr.rel (0) target = $region13
    $region12: #{_lambda_.1} parent=1 // pred_region
      _
    $region13: #{_lambda_.1} parent=1 // pred_fallthru
      _
    // Predicated region
    $region14: #{_lambda_.1} parent=1 // pred_check
      _
    $region15: #{_lambda_.1} parent=1 // pred_check_branch
      %29 = sbr.rel (0) target = $region17
    $region16: #{_lambda_.1} parent=1 // pred_region
      _
    $region17: #{_lambda_.1} parent=1 // pred_fallthru
      _
    // Predicated region
    $region18: #{_lambda_.1} parent=1 // pred_check
      _
    $region19: #{_lambda_.1} parent=1 // pred_check_branch
      %31 = sbr.rel (0) target = $region21
    $region20: #{_lambda_.1} parent=1 // pred_region
      _
    $region21: #{_lambda_.1} parent=1 // pred_fallthru
      _
    // Predicated region
    $region22: #{_lambda_.1} parent=1 // pred_check
      _
    $region23: #{_lambda_.1} parent=1 // pred_check_branch
      %33 = sbr.rel (0) target = $region25
    $region24: #{_lambda_.1} parent=1 // pred_region
      %34 = dma.done [#allocation3], 8192
    $region25: #{_lambda_.1} parent=1 // pred_fallthru
      _
    %v36 = vld [vmem:[%s0] sm:$0xff]
    %v37 = vld [vmem:[#allocation2] sm:$0xf]
    %v38 = vld [vmem:[#allocation2 + $0x4] sm:$0xf]
    %v39 = vld [vmem:[#allocation2 + $0x8] sm:$0xf]
    %v40 = vld [vmem:[#allocation2 + $0xc] sm:$0xf]
    %v41 = vld [vmem:[#allocation2 + $0x10] sm:$0xf]
    %v42 = vld [vmem:[#allocation2 + $0x14] sm:$0xf]
    %v43 = vld [vmem:[#allocation2 + $0x18] sm:$0xf]
    %v44 = vld [vmem:[#allocation2 + $0x1c] sm:$0xf]
    %v45 = vld [vmem:[#allocation2 + $0x20] sm:$0xf]
    %v46 = vld [vmem:[#allocation2 + $0x24] sm:$0xf]
    %v47 = vld [vmem:[#allocation2 + $0x28] sm:$0xf]
    %v48 = vld [vmem:[#allocation2 + $0x2c] sm:$0xf]
    %v49 = vld [vmem:[#allocation2 + $0x30] sm:$0xf]
    %v50 = vld [vmem:[#allocation2 + $0x34] sm:$0xf]
    %v51 = vld [vmem:[#allocation2 + $0x38] sm:$0xf]
    %v52 = vld [vmem:[#allocation2 + $0x3c] sm:$0xf]
    %v53 = vld [vmem:[#allocation2 + $0x40] sm:$0xf]
    %v54 = vld [vmem:[#allocation2 + $0x44] sm:$0xf]
    %v55 = vld [vmem:[#allocation2 + $0x48] sm:$0xf]
    %v56 = vld [vmem:[#allocation2 + $0x4c] sm:$0xf]
    %v57 = vld [vmem:[#allocation2 + $0x50] sm:$0xf]
    %v58 = vld [vmem:[#allocation2 + $0x54] sm:$0xf]
    %v59 = vld [vmem:[#allocation2 + $0x58] sm:$0xf]
    %v60 = vld [vmem:[#allocation2 + $0x5c] sm:$0xf]
    %v61 = vld [vmem:[#allocation2 + $0x60] sm:$0xf]
    %v62 = vld [vmem:[#allocation2 + $0x64] sm:$0xf]
    %v63 = vld [vmem:[#allocation2 + $0x68] sm:$0xf]
    %v64 = vld [vmem:[#allocation2 + $0x6c] sm:$0xf]
    %v65 = vld [vmem:[#allocation2 + $0x70] sm:$0xf]
    %v66 = vld [vmem:[#allocation2 + $0x74] sm:$0xf]
    %v67 = vld [vmem:[#allocation2 + $0x78] sm:$0xf]
    %v68 = vld [vmem:[#allocation2 + $0x7c] sm:$0xf]
    %v69 = vld [vmem:[#allocation2 + $0x80] sm:$0xf]
    %v70 = vld [vmem:[#allocation2 + $0x84] sm:$0xf]
    %v71 = vld [vmem:[#allocation2 + $0x88] sm:$0xf]
    %v72 = vld [vmem:[#allocation2 + $0x8c] sm:$0xf]
    %v73 = vld [vmem:[#allocation2 + $0x90] sm:$0xf]
    %v74 = vld [vmem:[#allocation2 + $0x94] sm:$0xf]
    %v75 = vld [vmem:[#allocation2 + $0x98] sm:$0xf]
    %v76 = vld [vmem:[#allocation2 + $0x9c] sm:$0xf]
    %v77 = vld [vmem:[#allocation2 + $0xa0] sm:$0xf]
    %v78 = vld [vmem:[#allocation2 + $0xa4] sm:$0xf]
    %v79 = vld [vmem:[#allocation2 + $0xa8] sm:$0xf]
    %v80 = vld [vmem:[#allocation2 + $0xac] sm:$0xf]
    %v81 = vld [vmem:[#allocation2 + $0xb0] sm:$0xf]
    %v82 = vld [vmem:[#allocation2 + $0xb4] sm:$0xf]
    %v83 = vld [vmem:[#allocation2 + $0xb8] sm:$0xf]
    %v84 = vld [vmem:[#allocation2 + $0xbc] sm:$0xf]
    %v85 = vld [vmem:[#allocation2 + $0xc0] sm:$0xf]
    %v86 = vld [vmem:[#allocation2 + $0xc4] sm:$0xf]
    %v87 = vld [vmem:[#allocation2 + $0xc8] sm:$0xf]
    %v88 = vld [vmem:[#allocation2 + $0xcc] sm:$0xf]
    %v89 = vld [vmem:[#allocation2 + $0xd0] sm:$0xf]
    %v90 = vld [vmem:[#allocation2 + $0xd4] sm:$0xf]
    %v91 = vld [vmem:[#allocation2 + $0xd8] sm:$0xf]
    %v92 = vld [vmem:[#allocation2 + $0xdc] sm:$0xf]
    %v93 = vld [vmem:[#allocation2 + $0xe0] sm:$0xf]
    %v94 = vld [vmem:[#allocation2 + $0xe4] sm:$0xf]
    %v95 = vld [vmem:[#allocation2 + $0xe8] sm:$0xf]
    %v96 = vld [vmem:[#allocation2 + $0xec] sm:$0xf]
    %v97 = vld [vmem:[#allocation2 + $0xf0] sm:$0xf]
    %v98 = vld [vmem:[#allocation2 + $0xf4] sm:$0xf]
    %v99 = vld [vmem:[#allocation2 + $0xf8] sm:$0xf]
    %v100 = vld [vmem:[#allocation2 + $0xfc] sm:$0xf]
    %v101 = vld [vmem:[#allocation2 + $0x100] sm:$0xf]
    %v102 = vld [vmem:[#allocation2 + $0x104] sm:$0xf]
    %v103 = vld [vmem:[#allocation2 + $0x108] sm:$0xf]
    %v104 = vld [vmem:[#allocation2 + $0x10c] sm:$0xf]
    %v105 = vld [vmem:[#allocation2 + $0x110] sm:$0xf]
    %v106 = vld [vmem:[#allocation2 + $0x114] sm:$0xf]
    %v107 = vld [vmem:[#allocation2 + $0x118] sm:$0xf]
    %v108 = vld [vmem:[#allocation2 + $0x11c] sm:$0xf]
    %v109 = vld [vmem:[#allocation2 + $0x120] sm:$0xf]
    %v110 = vld [vmem:[#allocation2 + $0x124] sm:$0xf]
    %v111 = vld [vmem:[#allocation2 + $0x128] sm:$0xf]
    %v112 = vld [vmem:[#allocation2 + $0x12c] sm:$0xf]
    %v113 = vld [vmem:[#allocation2 + $0x130] sm:$0xf]
    %v114 = vld [vmem:[#allocation2 + $0x134] sm:$0xf]
    %v115 = vld [vmem:[#allocation2 + $0x138] sm:$0xf]
    %v116 = vld [vmem:[#allocation2 + $0x13c] sm:$0xf]
    %v117 = vld [vmem:[#allocation2 + $0x140] sm:$0xf]
    %v118 = vld [vmem:[#allocation2 + $0x144] sm:$0xf]
    %v119 = vld [vmem:[#allocation2 + $0x148] sm:$0xf]
    %v120 = vld [vmem:[#allocation2 + $0x14c] sm:$0xf]
    %v121 = vld [vmem:[#allocation2 + $0x150] sm:$0xf]
    %v122 = vld [vmem:[#allocation2 + $0x154] sm:$0xf]
    %v123 = vld [vmem:[#allocation2 + $0x158] sm:$0xf]
    %v124 = vld [vmem:[#allocation2 + $0x15c] sm:$0xf]
    %v125 = vld [vmem:[#allocation2 + $0x160] sm:$0xf]
    %v126 = vld [vmem:[#allocation2 + $0x164] sm:$0xf]
    %v127 = vld [vmem:[#allocation2 + $0x168] sm:$0xf]
    %v128 = vld [vmem:[#allocation2 + $0x16c] sm:$0xf]
    %v129 = vld [vmem:[#allocation2 + $0x170] sm:$0xf]
    %v130 = vld [vmem:[#allocation2 + $0x174] sm:$0xf]
    %v131 = vld [vmem:[#allocation2 + $0x178] sm:$0xf]
    %v132 = vld [vmem:[#allocation2 + $0x17c] sm:$0xf]
    %v133 = vld [vmem:[#allocation2 + $0x180] sm:$0xf]
    %v134 = vld [vmem:[#allocation2 + $0x184] sm:$0xf]
    %v135 = vld [vmem:[#allocation2 + $0x188] sm:$0xf]
    %v136 = vld [vmem:[#allocation2 + $0x18c] sm:$0xf]
    %v137 = vld [vmem:[#allocation2 + $0x190] sm:$0xf]
    %v138 = vld [vmem:[#allocation2 + $0x194] sm:$0xf]
    %v139 = vld [vmem:[#allocation2 + $0x198] sm:$0xf]
    %v140 = vld [vmem:[#allocation2 + $0x19c] sm:$0xf]
    %v141 = vld [vmem:[#allocation2 + $0x1a0] sm:$0xf]
    %v142 = vld [vmem:[#allocation2 + $0x1a4] sm:$0xf]
    %v143 = vld [vmem:[#allocation2 + $0x1a8] sm:$0xf]
    %v144 = vld [vmem:[#allocation2 + $0x1ac] sm:$0xf]
    %v145 = vld [vmem:[#allocation2 + $0x1b0] sm:$0xf]
    %v146 = vld [vmem:[#allocation2 + $0x1b4] sm:$0xf]
    %v147 = vld [vmem:[#allocation2 + $0x1b8] sm:$0xf]
    %v148 = vld [vmem:[#allocation2 + $0x1bc] sm:$0xf]
    %v149 = vld [vmem:[#allocation2 + $0x1c0] sm:$0xf]
    %v150 = vld [vmem:[#allocation2 + $0x1c4] sm:$0xf]
    %v151 = vld [vmem:[#allocation2 + $0x1c8] sm:$0xf]
    %v152 = vld [vmem:[#allocation2 + $0x1cc] sm:$0xf]
    %v153 = vld [vmem:[#allocation2 + $0x1d0] sm:$0xf]
    %v154 = vld [vmem:[#allocation2 + $0x1d4] sm:$0xf]
    %v155 = vld [vmem:[#allocation2 + $0x1d8] sm:$0xf]
    %v156 = vld [vmem:[#allocation2 + $0x1dc] sm:$0xf]
    %v157 = vld [vmem:[#allocation2 + $0x1e0] sm:$0xf]
    %v158 = vld [vmem:[#allocation2 + $0x1e4] sm:$0xf]
    %v159 = vld [vmem:[#allocation2 + $0x1e8] sm:$0xf]
    %v160 = vld [vmem:[#allocation2 + $0x1ec] sm:$0xf]
    %v161 = vld [vmem:[#allocation2 + $0x1f0] sm:$0xf]
    %v162 = vld [vmem:[#allocation2 + $0x1f4] sm:$0xf]
    %v163 = vld [vmem:[#allocation2 + $0x1f8] sm:$0xf]
    %v164 = vld [vmem:[#allocation2 + $0x1fc] sm:$0xf]
    %v165 = vld [vmem:[%s2] sm:$0x1]
    %v167 = vlaneseq
    %v168 = vshrl.u32 %v167, 7
    %v169 = vsub.s32 0, %v168
    %v170 = vrot.slane %v165, %v169
    %v173 = vcombine.high %v36, %v36
    %v175 = vunpack.c.l.s4 1966171168
    %v176 = vunpack.c.0.s8 %v175
    %v177 = vlaneseq
    %v178 = vshrl.u32 %v177, 7
    %v179 = vsub.s32 %v176, %v178
    %v180 = vrot.slane %v36, %v179
    %v182 = vunpack.c.l.s4 1966171168
    %v183 = vunpack.c.0.s8 %v182
    %v184 = vlaneseq
    %v185 = vshrl.u32 %v184, 7
    %v186 = vsub.s32 %v183, %v185
    %v187 = vrot.slane %v173, %v186
    %v188 = vcombine.high %v180, %v180
    %v189 = vcombine.high %v187, %v187
    %v191 = vunpack.c.l.s4 1966171168
    %v192 = vunpack.c.0.s8 %v191
    %v193 = vlaneseq
    %v194 = vshrl.u32 %v193, 7
    %v195 = vsub.s32 %v192, %v194
    %v196 = vrot.slane %v180, %v195
    %v198 = vunpack.c.l.s4 1966171168
    %v199 = vunpack.c.0.s8 %v198
    %v200 = vlaneseq
    %v201 = vshrl.u32 %v200, 7
    %v202 = vsub.s32 %v199, %v201
    %v203 = vrot.slane %v187, %v202
    %v205 = vunpack.c.l.s4 1966171168
    %v206 = vunpack.c.0.s8 %v205
    %v207 = vlaneseq
    %v208 = vshrl.u32 %v207, 7
    %v209 = vsub.s32 %v206, %v208
    %v210 = vrot.slane %v188, %v209
    %v212 = vunpack.c.l.s4 1966171168
    %v213 = vunpack.c.0.s8 %v212
    %v214 = vlaneseq
    %v215 = vshrl.u32 %v214, 7
    %v216 = vsub.s32 %v213, %v215
    %v217 = vrot.slane %v189, %v216
    %v218 = vcombine.high %v196, %v196
    %v219 = vcombine.high %v203, %v203
    %v220 = vcombine.high %v210, %v210
    %v221 = vcombine.high %v217, %v217
    %v358 = vunpack.c.l.b16 %v37
    %v359 = vunpack.c.l.b16 %v38
    %v360 = vunpack.c.l.b16 %v39
    %v361 = vunpack.c.l.b16 %v40
    %v362 = vunpack.c.l.b16 %v41
    %v363 = vunpack.c.l.b16 %v42
    %v364 = vunpack.c.l.b16 %v43
    %v365 = vunpack.c.l.b16 %v44
    %v366 = vunpack.c.l.b16 %v45
    %v367 = vunpack.c.l.b16 %v46
    %v368 = vunpack.c.l.b16 %v47
    %v369 = vunpack.c.l.b16 %v48
    %v370 = vunpack.c.l.b16 %v49
    %v371 = vunpack.c.l.b16 %v50
    %v372 = vunpack.c.l.b16 %v51
    %v373 = vunpack.c.l.b16 %v52
    %v374 = vunpack.c.l.b16 %v53
    %v375 = vunpack.c.l.b16 %v54
    %v376 = vunpack.c.l.b16 %v55
    %v377 = vunpack.c.l.b16 %v56
    %v378 = vunpack.c.l.b16 %v57
    %v379 = vunpack.c.l.b16 %v58
    %v380 = vunpack.c.l.b16 %v59
    %v381 = vunpack.c.l.b16 %v60
    %v382 = vunpack.c.l.b16 %v61
    %v383 = vunpack.c.l.b16 %v62
    %v384 = vunpack.c.l.b16 %v63
    %v385 = vunpack.c.l.b16 %v64
    %v386 = vunpack.c.l.b16 %v65
    %v387 = vunpack.c.l.b16 %v66
    %v388 = vunpack.c.l.b16 %v67
    %v389 = vunpack.c.l.b16 %v68
    %v390 = vunpack.c.l.b16 %v69
    %v391 = vunpack.c.l.b16 %v70
    %v392 = vunpack.c.l.b16 %v71
    %v393 = vunpack.c.l.b16 %v72
    %v394 = vunpack.c.l.b16 %v73
    %v395 = vunpack.c.l.b16 %v74
    %v396 = vunpack.c.l.b16 %v75
    %v397 = vunpack.c.l.b16 %v76
    %v398 = vunpack.c.l.b16 %v77
    %v399 = vunpack.c.l.b16 %v78
    %v400 = vunpack.c.l.b16 %v79
    %v401 = vunpack.c.l.b16 %v80
    %v402 = vunpack.c.l.b16 %v81
    %v403 = vunpack.c.l.b16 %v82
    %v404 = vunpack.c.l.b16 %v83
    %v405 = vunpack.c.l.b16 %v84
    %v406 = vunpack.c.l.b16 %v85
    %v407 = vunpack.c.l.b16 %v86
    %v408 = vunpack.c.l.b16 %v87
    %v409 = vunpack.c.l.b16 %v88
    %v410 = vunpack.c.l.b16 %v89
    %v411 = vunpack.c.l.b16 %v90
    %v412 = vunpack.c.l.b16 %v91
    %v413 = vunpack.c.l.b16 %v92
    %v414 = vunpack.c.l.b16 %v93
    %v415 = vunpack.c.l.b16 %v94
    %v416 = vunpack.c.l.b16 %v95
    %v417 = vunpack.c.l.b16 %v96
    %v418 = vunpack.c.l.b16 %v97
    %v419 = vunpack.c.l.b16 %v98
    %v420 = vunpack.c.l.b16 %v99
    %v421 = vunpack.c.l.b16 %v100
    %v422 = vunpack.c.l.b16 %v101
    %v423 = vunpack.c.l.b16 %v102
    %v424 = vunpack.c.l.b16 %v103
    %v425 = vunpack.c.l.b16 %v104
    %v426 = vunpack.c.l.b16 %v105
    %v427 = vunpack.c.l.b16 %v106
    %v428 = vunpack.c.l.b16 %v107
    %v429 = vunpack.c.l.b16 %v108
    %v430 = vunpack.c.l.b16 %v109
    %v431 = vunpack.c.l.b16 %v110
    %v432 = vunpack.c.l.b16 %v111
    %v433 = vunpack.c.l.b16 %v112
    %v434 = vunpack.c.l.b16 %v113
    %v435 = vunpack.c.l.b16 %v114
    %v436 = vunpack.c.l.b16 %v115
    %v437 = vunpack.c.l.b16 %v116
    %v438 = vunpack.c.l.b16 %v117
    %v439 = vunpack.c.l.b16 %v118
    %v440 = vunpack.c.l.b16 %v119
    %v441 = vunpack.c.l.b16 %v120
    %v442 = vunpack.c.l.b16 %v121
    %v443 = vunpack.c.l.b16 %v122
    %v444 = vunpack.c.l.b16 %v123
    %v445 = vunpack.c.l.b16 %v124
    %v446 = vunpack.c.l.b16 %v125
    %v447 = vunpack.c.l.b16 %v126
    %v448 = vunpack.c.l.b16 %v127
    %v449 = vunpack.c.l.b16 %v128
    %v450 = vunpack.c.l.b16 %v129
    %v451 = vunpack.c.l.b16 %v130
    %v452 = vunpack.c.l.b16 %v131
    %v453 = vunpack.c.l.b16 %v132
    %v454 = vunpack.c.l.b16 %v133
    %v455 = vunpack.c.l.b16 %v134
    %v456 = vunpack.c.l.b16 %v135
    %v457 = vunpack.c.l.b16 %v136
    %v458 = vunpack.c.l.b16 %v137
    %v459 = vunpack.c.l.b16 %v138
    %v460 = vunpack.c.l.b16 %v139
    %v461 = vunpack.c.l.b16 %v140
    %v462 = vunpack.c.l.b16 %v141
    %v463 = vunpack.c.l.b16 %v142
    %v464 = vunpack.c.l.b16 %v143
    %v465 = vunpack.c.l.b16 %v144
    %v466 = vunpack.c.l.b16 %v145
    %v467 = vunpack.c.l.b16 %v146
    %v468 = vunpack.c.l.b16 %v147
    %v469 = vunpack.c.l.b16 %v148
    %v470 = vunpack.c.l.b16 %v149
    %v471 = vunpack.c.l.b16 %v150
    %v472 = vunpack.c.l.b16 %v151
    %v473 = vunpack.c.l.b16 %v152
    %v474 = vunpack.c.l.b16 %v153
    %v475 = vunpack.c.l.b16 %v154
    %v476 = vunpack.c.l.b16 %v155
    %v477 = vunpack.c.l.b16 %v156
    %v478 = vunpack.c.l.b16 %v157
    %v479 = vunpack.c.l.b16 %v158
    %v480 = vunpack.c.l.b16 %v159
    %v481 = vunpack.c.l.b16 %v160
    %v482 = vunpack.c.l.b16 %v161
    %v483 = vunpack.c.l.b16 %v162
    %v484 = vunpack.c.l.b16 %v163
    %v485 = vunpack.c.l.b16 %v164
    %v486 = vpack.c.b16 %v359, %v358
    %v487 = vpack.c.b16 %v361, %v360
    %v488 = vpack.c.b16 %v363, %v362
    %v489 = vpack.c.b16 %v365, %v364
    %v490 = vpack.c.b16 %v367, %v366
    %v491 = vpack.c.b16 %v369, %v368
    %v492 = vpack.c.b16 %v371, %v370
    %v493 = vpack.c.b16 %v373, %v372
    %v494 = vpack.c.b16 %v375, %v374
    %v495 = vpack.c.b16 %v377, %v376
    %v496 = vpack.c.b16 %v379, %v378
    %v497 = vpack.c.b16 %v381, %v380
    %v498 = vpack.c.b16 %v383, %v382
    %v499 = vpack.c.b16 %v385, %v384
    %v500 = vpack.c.b16 %v387, %v386
    %v501 = vpack.c.b16 %v389, %v388
    %v502 = vpack.c.b16 %v391, %v390
    %v503 = vpack.c.b16 %v393, %v392
    %v504 = vpack.c.b16 %v395, %v394
    %v505 = vpack.c.b16 %v397, %v396
    %v506 = vpack.c.b16 %v399, %v398
    %v507 = vpack.c.b16 %v401, %v400
    %v508 = vpack.c.b16 %v403, %v402
    %v509 = vpack.c.b16 %v405, %v404
    %v510 = vpack.c.b16 %v407, %v406
    %v511 = vpack.c.b16 %v409, %v408
    %v512 = vpack.c.b16 %v411, %v410
    %v513 = vpack.c.b16 %v413, %v412
    %v514 = vpack.c.b16 %v415, %v414
    %v515 = vpack.c.b16 %v417, %v416
    %v516 = vpack.c.b16 %v419, %v418
    %v517 = vpack.c.b16 %v421, %v420
    %v518 = vpack.c.b16 %v423, %v422
    %v519 = vpack.c.b16 %v425, %v424
    %v520 = vpack.c.b16 %v427, %v426
    %v521 = vpack.c.b16 %v429, %v428
    %v522 = vpack.c.b16 %v431, %v430
    %v523 = vpack.c.b16 %v433, %v432
    %v524 = vpack.c.b16 %v435, %v434
    %v525 = vpack.c.b16 %v437, %v436
    %v526 = vpack.c.b16 %v439, %v438
    %v527 = vpack.c.b16 %v441, %v440
    %v528 = vpack.c.b16 %v443, %v442
    %v529 = vpack.c.b16 %v445, %v444
    %v530 = vpack.c.b16 %v447, %v446
    %v531 = vpack.c.b16 %v449, %v448
    %v532 = vpack.c.b16 %v451, %v450
    %v533 = vpack.c.b16 %v453, %v452
    %v534 = vpack.c.b16 %v455, %v454
    %v535 = vpack.c.b16 %v457, %v456
    %v536 = vpack.c.b16 %v459, %v458
    %v537 = vpack.c.b16 %v461, %v460
    %v538 = vpack.c.b16 %v463, %v462
    %v539 = vpack.c.b16 %v465, %v464
    %v540 = vpack.c.b16 %v467, %v466
    %v541 = vpack.c.b16 %v469, %v468
    %v542 = vpack.c.b16 %v471, %v470
    %v543 = vpack.c.b16 %v473, %v472
    %v544 = vpack.c.b16 %v475, %v474
    %v545 = vpack.c.b16 %v477, %v476
    %v546 = vpack.c.b16 %v479, %v478
    %v547 = vpack.c.b16 %v481, %v480
    %v548 = vpack.c.b16 %v483, %v482
    %v549 = vpack.c.b16 %v485, %v484
    %614 = vmatprep.subr.bf16.mxu0 0
    %615 = vmatpush1.bf16.msra.mxu0 %v486
    %616 = vmatprep.subr.bf16.mxu0 0
    %617 = vmatpush1.bf16.msra.mxu0 %v487
    %618 = vmatprep.subr.bf16.mxu0 0
    %619 = vmatpush1.bf16.msra.mxu0 %v488
    %620 = vmatprep.subr.bf16.mxu0 0
    %621 = vmatpush1.bf16.msra.mxu0 %v489
    %622 = vmatprep.subr.bf16.mxu0 0
    %623 = vmatpush1.bf16.msra.mxu0 %v490
    %624 = vmatprep.subr.bf16.mxu0 0
    %625 = vmatpush1.bf16.msra.mxu0 %v491
    %626 = vmatprep.subr.bf16.mxu0 0
    %627 = vmatpush1.bf16.msra.mxu0 %v492
    %628 = vmatprep.subr.bf16.mxu0 0
    %629 = vmatpush1.bf16.msra.mxu0 %v493
    %630 = vmatprep.subr.bf16.mxu0 0
    %631 = vmatpush1.bf16.msra.mxu0 %v494
    %632 = vmatprep.subr.bf16.mxu0 0
    %633 = vmatpush1.bf16.msra.mxu0 %v495
    %634 = vmatprep.subr.bf16.mxu0 0
    %635 = vmatpush1.bf16.msra.mxu0 %v496
    %636 = vmatprep.subr.bf16.mxu0 0
    %637 = vmatpush1.bf16.msra.mxu0 %v497
    %638 = vmatprep.subr.bf16.mxu0 0
    %639 = vmatpush1.bf16.msra.mxu0 %v498
    %640 = vmatprep.subr.bf16.mxu0 0
    %641 = vmatpush1.bf16.msra.mxu0 %v499
    %642 = vmatprep.subr.bf16.mxu0 0
    %643 = vmatpush1.bf16.msra.mxu0 %v500
    %644 = vmatprep.subr.bf16.mxu0 0
    %645 = vmatpush1.bf16.msra.mxu0 %v501
    %646 = vmatprep.mubr.bf16.mxu0 %v210
    %647 = vmatmul.mubr.bf16.gmra.mrb[0].mxu0 %v196
    %v648 = vpop.f32.mrb[0].mxu0
    %v649 = vadd.f32 %v170, %v648
    %v650 = vpop.f32.mrb[0].mxu0
    %v651 = vpop.f32.mrb[0].mxu0
    %v652 = vpop.f32.mrb[0].mxu0
    %653 = vdwg.mxu0
    %654 = vmatprep.subr.bf16.mxu0 0
    %655 = vmatpush1.bf16.msra.mxu0 %v502
    %656 = vmatprep.subr.bf16.mxu0 0
    %657 = vmatpush1.bf16.msra.mxu0 %v503
    %658 = vmatprep.subr.bf16.mxu0 0
    %659 = vmatpush1.bf16.msra.mxu0 %v504
    %660 = vmatprep.subr.bf16.mxu0 0
    %661 = vmatpush1.bf16.msra.mxu0 %v505
    %662 = vmatprep.subr.bf16.mxu0 0
    %663 = vmatpush1.bf16.msra.mxu0 %v506
    %664 = vmatprep.subr.bf16.mxu0 0
    %665 = vmatpush1.bf16.msra.mxu0 %v507
    %666 = vmatprep.subr.bf16.mxu0 0
    %667 = vmatpush1.bf16.msra.mxu0 %v508
    %668 = vmatprep.subr.bf16.mxu0 0
    %669 = vmatpush1.bf16.msra.mxu0 %v509
    %670 = vmatprep.subr.bf16.mxu0 0
    %671 = vmatpush1.bf16.msra.mxu0 %v510
    %672 = vmatprep.subr.bf16.mxu0 0
    %673 = vmatpush1.bf16.msra.mxu0 %v511
    %674 = vmatprep.subr.bf16.mxu0 0
    %675 = vmatpush1.bf16.msra.mxu0 %v512
    %676 = vmatprep.subr.bf16.mxu0 0
    %677 = vmatpush1.bf16.msra.mxu0 %v513
    %678 = vmatprep.subr.bf16.mxu0 0
    %679 = vmatpush1.bf16.msra.mxu0 %v514
    %680 = vmatprep.subr.bf16.mxu0 0
    %681 = vmatpush1.bf16.msra.mxu0 %v515
    %682 = vmatprep.subr.bf16.mxu0 0
    %683 = vmatpush1.bf16.msra.mxu0 %v516
    %684 = vmatprep.subr.bf16.mxu0 0
    %685 = vmatpush1.bf16.msra.mxu0 %v517
    %686 = vmatprep.mubr.bf16.mxu0 %v220
    %687 = vmatmul.mubr.bf16.gmra.mrb[0].mxu0 %v218
    %v688 = vpop.f32.mrb[0].mxu0
    %v689 = vadd.f32 %v649, %v688
    %v690 = vpop.f32.mrb[0].mxu0
    %v691 = vpop.f32.mrb[0].mxu0
    %v692 = vpop.f32.mrb[0].mxu0
    %693 = vdwg.mxu0
    %694 = vmatprep.subr.bf16.mxu0 0
    %695 = vmatpush1.bf16.msra.mxu0 %v518
    %696 = vmatprep.subr.bf16.mxu0 0
    %697 = vmatpush1.bf16.msra.mxu0 %v519
    %698 = vmatprep.subr.bf16.mxu0 0
    %699 = vmatpush1.bf16.msra.mxu0 %v520
    %700 = vmatprep.subr.bf16.mxu0 0
    %701 = vmatpush1.bf16.msra.mxu0 %v521
    %702 = vmatprep.subr.bf16.mxu0 0
    %703 = vmatpush1.bf16.msra.mxu0 %v522
    %704 = vmatprep.subr.bf16.mxu0 0
    %705 = vmatpush1.bf16.msra.mxu0 %v523
    %706 = vmatprep.subr.bf16.mxu0 0
    %707 = vmatpush1.bf16.msra.mxu0 %v524
    %708 = vmatprep.subr.bf16.mxu0 0
    %709 = vmatpush1.bf16.msra.mxu0 %v525
    %710 = vmatprep.subr.bf16.mxu0 0
    %711 = vmatpush1.bf16.msra.mxu0 %v526
    %712 = vmatprep.subr.bf16.mxu0 0
    %713 = vmatpush1.bf16.msra.mxu0 %v527
    %714 = vmatprep.subr.bf16.mxu0 0
    %715 = vmatpush1.bf16.msra.mxu0 %v528
    %716 = vmatprep.subr.bf16.mxu0 0
    %717 = vmatpush1.bf16.msra.mxu0 %v529
    %718 = vmatprep.subr.bf16.mxu0 0
    %719 = vmatpush1.bf16.msra.mxu0 %v530
    %720 = vmatprep.subr.bf16.mxu0 0
    %721 = vmatpush1.bf16.msra.mxu0 %v531
    %722 = vmatprep.subr.bf16.mxu0 0
    %723 = vmatpush1.bf16.msra.mxu0 %v532
    %724 = vmatprep.subr.bf16.mxu0 0
    %725 = vmatpush1.bf16.msra.mxu0 %v533
    %726 = vmatprep.mubr.bf16.mxu0 %v217
    %727 = vmatmul.mubr.bf16.gmra.mrb[0].mxu0 %v203
    %v728 = vpop.f32.mrb[0].mxu0
    %v729 = vadd.f32 %v689, %v728
    %v730 = vpop.f32.mrb[0].mxu0
    %v731 = vpop.f32.mrb[0].mxu0
    %v732 = vpop.f32.mrb[0].mxu0
    %733 = vdwg.mxu0
    %734 = vmatprep.subr.bf16.mxu0 0
    %735 = vmatpush1.bf16.msra.mxu0 %v534
    %736 = vmatprep.subr.bf16.mxu0 0
    %737 = vmatpush1.bf16.msra.mxu0 %v535
    %738 = vmatprep.subr.bf16.mxu0 0
    %739 = vmatpush1.bf16.msra.mxu0 %v536
    %740 = vmatprep.subr.bf16.mxu0 0
    %741 = vmatpush1.bf16.msra.mxu0 %v537
    %742 = vmatprep.subr.bf16.mxu0 0
    %743 = vmatpush1.bf16.msra.mxu0 %v538
    %744 = vmatprep.subr.bf16.mxu0 0
    %745 = vmatpush1.bf16.msra.mxu0 %v539
    %746 = vmatprep.subr.bf16.mxu0 0
    %747 = vmatpush1.bf16.msra.mxu0 %v540
    %748 = vmatprep.subr.bf16.mxu0 0
    %749 = vmatpush1.bf16.msra.mxu0 %v541
    %750 = vmatprep.subr.bf16.mxu0 0
    %751 = vmatpush1.bf16.msra.mxu0 %v542
    %752 = vmatprep.subr.bf16.mxu0 0
    %753 = vmatpush1.bf16.msra.mxu0 %v543
    %754 = vmatprep.subr.bf16.mxu0 0
    %755 = vmatpush1.bf16.msra.mxu0 %v544
    %756 = vmatprep.subr.bf16.mxu0 0
    %757 = vmatpush1.bf16.msra.mxu0 %v545
    %758 = vmatprep.subr.bf16.mxu0 0
    %759 = vmatpush1.bf16.msra.mxu0 %v546
    %760 = vmatprep.subr.bf16.mxu0 0
    %761 = vmatpush1.bf16.msra.mxu0 %v547
    %762 = vmatprep.subr.bf16.mxu0 0
    %763 = vmatpush1.bf16.msra.mxu0 %v548
    %764 = vmatprep.subr.bf16.mxu0 0
    %765 = vmatpush1.bf16.msra.mxu0 %v549
    %766 = vmatprep.mubr.bf16.mxu0 %v221
    %767 = vmatmul.mubr.bf16.gmra.mrb[0].mxu0 %v219
    %v768 = vpop.f32.mrb[0].mxu0
    %v769 = vadd.f32 %v729, %v768
    %v770 = vpop.f32.mrb[0].mxu0
    %v771 = vpop.f32.mrb[0].mxu0
    %v772 = vpop.f32.mrb[0].mxu0
    %773 = vdwg.mxu0
    %v774 = vmax.f32 %v769, 0.0
    %v775 = vpack.c.bf16 %v774, %v774
    %v776 = vld [vmem:[%s3] sm:$0xf]
    %v777 = vld [vmem:[%s3 + $0x4] sm:$0xf]
    %v778 = vld [vmem:[%s3 + $0x8] sm:$0xf]
    %v779 = vld [vmem:[%s3 + $0xc] sm:$0xf]
    %v780 = vld [vmem:[%s3 + $0x10] sm:$0xf]
    %v781 = vld [vmem:[%s3 + $0x14] sm:$0xf]
    %v782 = vld [vmem:[%s3 + $0x18] sm:$0xf]
    %v783 = vld [vmem:[%s3 + $0x1c] sm:$0xf]
    %v784 = vld [vmem:[%s3 + $0x20] sm:$0xf]
    %v785 = vld [vmem:[%s3 + $0x24] sm:$0xf]
    %v786 = vld [vmem:[%s3 + $0x28] sm:$0xf]
    %v787 = vld [vmem:[%s3 + $0x2c] sm:$0xf]
    %v788 = vld [vmem:[%s3 + $0x30] sm:$0xf]
    %v789 = vld [vmem:[%s3 + $0x34] sm:$0xf]
    %v790 = vld [vmem:[%s3 + $0x38] sm:$0xf]
    %v791 = vld [vmem:[%s3 + $0x3c] sm:$0xf]
    %v792 = vld [vmem:[%s4] sm:$0x1]
    %v794 = vlaneseq
    %v795 = vshrl.u32 %v794, 7
    %v796 = vsub.s32 0, %v795
    %v797 = vrot.slane %v792, %v796
    %v815 = vunpack.c.l.b16 %v776
    %v816 = vunpack.c.l.b16 %v777
    %v817 = vunpack.c.l.b16 %v778
    %v818 = vunpack.c.l.b16 %v779
    %v819 = vunpack.c.l.b16 %v780
    %v820 = vunpack.c.l.b16 %v781
    %v821 = vunpack.c.l.b16 %v782
    %v822 = vunpack.c.l.b16 %v783
    %v823 = vunpack.c.l.b16 %v784
    %v824 = vunpack.c.l.b16 %v785
    %v825 = vunpack.c.l.b16 %v786
    %v826 = vunpack.c.l.b16 %v787
    %v827 = vunpack.c.l.b16 %v788
    %v828 = vunpack.c.l.b16 %v789
    %v829 = vunpack.c.l.b16 %v790
    %v830 = vunpack.c.l.b16 %v791
    %v831 = vpack.c.b16 %v816, %v815
    %v832 = vpack.c.b16 %v818, %v817
    %v833 = vpack.c.b16 %v820, %v819
    %v834 = vpack.c.b16 %v822, %v821
    %v835 = vpack.c.b16 %v824, %v823
    %v836 = vpack.c.b16 %v826, %v825
    %v837 = vpack.c.b16 %v828, %v827
    %v838 = vpack.c.b16 %v830, %v829
    %847 = vmatprep.subr.bf16.mxu0 0
    %848 = vmatpush1.bf16.msra.mxu0 %v831
    %849 = vmatprep.subr.bf16.mxu0 0
    %850 = vmatpush1.bf16.msra.mxu0 %v832
    %851 = vmatprep.subr.bf16.mxu0 0
    %852 = vmatpush1.bf16.msra.mxu0 %v833
    %853 = vmatprep.subr.bf16.mxu0 0
    %854 = vmatpush1.bf16.msra.mxu0 %v834
    %855 = vmatprep.subr.bf16.mxu0 0
    %856 = vmatpush1.bf16.msra.mxu0 %v835
    %857 = vmatprep.subr.bf16.mxu0 0
    %858 = vmatpush1.bf16.msra.mxu0 %v836
    %859 = vmatprep.subr.bf16.mxu0 0
    %860 = vmatpush1.bf16.msra.mxu0 %v837
    %861 = vmatprep.subr.bf16.mxu0 0
    %862 = vmatpush1.bf16.msra.mxu0 %v838
    %863 = vmatprep.subr.bf16.mxu0 0
    %864 = vmatpush1.bf16.msra.mxu0 0
    %865 = vmatprep.subr.bf16.mxu0 0
    %866 = vmatpush1.bf16.msra.mxu0 0
    %867 = vmatprep.subr.bf16.mxu0 0
    %868 = vmatpush1.bf16.msra.mxu0 0
    %869 = vmatprep.subr.bf16.mxu0 0
    %870 = vmatpush1.bf16.msra.mxu0 0
    %871 = vmatprep.subr.bf16.mxu0 0
    %872 = vmatpush1.bf16.msra.mxu0 0
    %873 = vmatprep.subr.bf16.mxu0 0
    %874 = vmatpush1.bf16.msra.mxu0 0
    %875 = vmatprep.subr.bf16.mxu0 0
    %876 = vmatpush1.bf16.msra.mxu0 0
    %877 = vmatprep.subr.bf16.mxu0 0
    %878 = vmatpush1.bf16.msra.mxu0 0
    %879 = vmatprep.mubr.bf16.mxu0 0
    %880 = vmatmul.mubr.bf16.gmra.mrb[0].mxu0 %v775
    %v881 = vpop.f32.mrb[0].mxu0
    %v882 = vadd.f32 %v797, %v881
    %v883 = vpop.f32.mrb[0].mxu0
    %v884 = vpop.f32.mrb[0].mxu0
    %v885 = vpop.f32.mrb[0].mxu0
    %886 = vdwg.mxu0
    %887 = vst [vmem:[#allocation5] sm:$0x3] %v882
    // Predicated region
    $region26: #{_lambda_.1} parent=1 // pred_check
      _
    $region27: #{_lambda_.1} parent=1 // pred_check_branch
      %889 = sbr.rel (0) target = $region29
    $region28: #{_lambda_.1} parent=1 // pred_region
      %s891 = ssub.s32 32, 32
      %892 = vsyncadd [#allocation4], %s891
      %s894 = sshll.u32 [#allocation5], 4
      %s895 = int_to_ptr.vmem [resolvable:$true] %s894
      %897 = dma.vmem_to_hbm [thread:$0]  %s895, 32, %s5, [#allocation4]
    $region29: #{_lambda_.1} parent=1 // pred_fallthru
      _
    // Predicated region
    $region30: #{_lambda_.1} parent=1 // pred_check
      _
    $region31: #{_lambda_.1} parent=1 // pred_check_branch
      %899 = sbr.rel (0) target = $region33
    $region32: #{_lambda_.1} parent=1 // pred_region
      %900 = dma.done [#allocation4], 32
    $region33: #{_lambda_.1} parent=1 // pred_fallthru
      _
    %901 = vsyncpa [#allocation3], 1
    %902 = vsyncpa [#allocation4], 1

</llo_original>
